<compile_context>
chip_gen: v5e
topology: v5e:2x2
jax: 0.10.0
libtpu: 0.0.40
codegen_flags: <defaults>
</compile_context>

<pallas_src>
import jax
import jax.numpy as jnp
from jax.experimental import pallas as pl
from jax.experimental.pallas import tpu as pltpu


_SQRT_2_OVER_PI = 0.7978845608028654
_GELU_C1 = _SQRT_2_OVER_PI * 0.044715  # folded constant


def _gelu_tanh(x):
    """tanh-approximate GELU with folded constants (VPU polynomial + one EUP tanh)."""
    u = x * (_SQRT_2_OVER_PI + _GELU_C1 * (x * x))
    hx = 0.5 * x
    return hx + hx * jnp.tanh(u)


def _default_compute_dtype():
    """bf16 elementwise/MXU operands on chips with a bf16 VPU/EUP (v6e/v7x); f32 else."""
    try:
        kind = jax.devices()[0].device_kind.lower()
    except Exception:
        return jnp.dtype(jnp.float32)
    if any(tag in kind for tag in ("v6", "v7", "7x")):
        return jnp.dtype(jnp.bfloat16)
    return jnp.dtype(jnp.float32)


def _pick_tile_n(n_seq, target=1024):
    """Largest divisor of n_seq that is <= target and a multiple of 8 (else whole N)."""
    if n_seq <= target:
        return n_seq
    start = target - (target % 8)
    for tn in range(start, 7, -8):
        if n_seq % tn == 0:
            return tn
    return n_seq


def _make_kernel(n_seq, tile_n):
    def kernel(x_ref, w1_ref, b1_ref, wdw_ref, bdw_ref, w2_ref, b2_ref,
               o_ref, hbuf_ref):
        cd = hbuf_ref.dtype                       # compute dtype (bf16 or f32)
        t = pl.program_id(1)
        n_tiles = pl.num_programs(1)
        start = t * tile_n
        if tile_n % 8 == 0:
            start = pl.multiple_of(start, 8)

        def lin1_act(rows_f32):
            # linear1 (f32 MXU accumulation) + GELU in the compute dtype.
            h = jnp.dot(rows_f32.astype(cd), w1_ref[...],
                        preferred_element_type=jnp.float32) + b1_ref[...]
            return _gelu_tanh(h.astype(cd))

        # --- linear1 + GELU on this tile's rows -------------------------------------
        x_tile = x_ref[0, pl.ds(start, tile_n), :]           # (TN, C) f32
        h = lin1_act(x_tile)                                  # (TN, H) cd

        # --- one halo row from each neighbouring tile (cheap 1-row matmuls) ----------
        prev_start = jnp.maximum(start - 1, 0)
        next_start = jnp.minimum(start + tile_n, n_seq - 1)
        h_prev = lin1_act(x_ref[0, pl.ds(prev_start, 1), :])  # (1, H)
        h_next = lin1_act(x_ref[0, pl.ds(next_start, 1), :])  # (1, H)

        # --- depthwise Conv1d (k=3, padding=1, groups=H) via halo scratch ------------
        # hbuf row r holds h[global row start-1+r]; taps are sublane-offset reads.
        hbuf_ref[pl.ds(0, 1), :] = h_prev
        hbuf_ref[pl.ds(1, tile_n), :] = h
        hbuf_ref[pl.ds(tile_n + 1, 1), :] = h_next

        @pl.when(t == 0)                           # zero-padding at n = 0
        def _zero_prev():
            hbuf_ref[pl.ds(0, 1), :] = jnp.zeros_like(h_prev)

        @pl.when(t == n_tiles - 1)                 # zero-padding at n = N-1
        def _zero_next():
            hbuf_ref[pl.ds(tile_n + 1, 1), :] = jnp.zeros_like(h_next)

        tap_m1 = hbuf_ref[pl.ds(0, tile_n), :]                # h[n-1]
        tap_p1 = hbuf_ref[pl.ds(2, tile_n), :]                # h[n+1]
        conv = (tap_m1 * wdw_ref[0:1, :]
                + h * wdw_ref[1:2, :]
                + tap_p1 * wdw_ref[2:3, :]
                + bdw_ref[...])
        a = _gelu_tanh(conv)                                  # (TN, H) cd

        # --- linear2 (f32 MXU accumulation) ------------------------------------------
        out = jnp.dot(a, w2_ref[...], preferred_element_type=jnp.float32) + b2_ref[...]
        o_ref[0] = out.astype(o_ref.dtype)

    return kernel


def fastleff_forward(x, w1, b1, w_dw, b_dw, w2, b2, *, compute_dtype=None, tile_n=None):
    """Fused FastLeFF forward.

    x:    (B, N, C)
    w1:   (C, H)   b1: (H,)
    w_dw: (3, H)   b_dw: (H,)   (depthwise taps, tap-major, channel in lanes)
    w2:   (H, C)   b2: (C,)
    """
    B, N, C = x.shape
    H = w1.shape[1]
    assert w1.shape == (C, H) and w_dw.shape == (3, H) and w2.shape == (H, C)
    assert b1.shape == (H,) and b_dw.shape == (H,) and b2.shape == (C,)

    cd = _default_compute_dtype() if compute_dtype is None else jnp.dtype(compute_dtype)
    tn = _pick_tile_n(N) if tile_n is None else int(tile_n)
    assert N % tn == 0 and (tn == N or tn % 8 == 0), (N, tn)
    n_tiles = N // tn

    # Per-step VMEM working set (x/out blocks are double-buffered by the pipeline).
    cdb = jnp.dtype(cd).itemsize
    est = (2 * N * C * 4                      # x block x2
           + 2 * tn * C * 4                   # out block x2
           + 2 * (C * H + H * C + 5 * H + C) * 4   # weights/biases x2 (upper bound)
           + (tn + 2) * H * cdb               # halo scratch
           + tn * H * (2 * 4 + 4 * cdb))      # live intermediates
    vmem_limit = int(min(max(2 * est, 32 * 1024 * 1024), 128 * 1024 * 1024))

    kernel = _make_kernel(N, tn)
    return pl.pallas_call(
        kernel,
        out_shape=jax.ShapeDtypeStruct((B, N, C), x.dtype),
        grid_spec=pltpu.PrefetchScalarGridSpec(
            num_scalar_prefetch=0,
            grid=(B, n_tiles),
            in_specs=[
                # Whole-sequence x for this batch element (only N*C*4 bytes) stays
                # resident across the inner tile axis => conv halo needs no extra DMA.
                pl.BlockSpec((1, N, C), lambda b, t: (b, 0, 0)),
                pl.BlockSpec((C, H), lambda b, t: (0, 0)),   # linear1 weight
                pl.BlockSpec((1, H), lambda b, t: (0, 0)),   # linear1 bias (f32)
                pl.BlockSpec((3, H), lambda b, t: (0, 0)),   # depthwise taps
                pl.BlockSpec((1, H), lambda b, t: (0, 0)),   # depthwise bias
                pl.BlockSpec((H, C), lambda b, t: (0, 0)),   # linear2 weight
                pl.BlockSpec((1, C), lambda b, t: (0, 0)),   # linear2 bias (f32)
            ],
            out_specs=pl.BlockSpec((1, tn, C), lambda b, t: (b, t, 0)),
            scratch_shapes=[pltpu.VMEM((tn + 2, H), cd)],    # conv halo scratch
        ),
        compiler_params=pltpu.CompilerParams(
            dimension_semantics=("parallel", "parallel"),
            vmem_limit_bytes=vmem_limit,
        ),
    )(x,
      w1.astype(cd), b1.reshape(1, H).astype(jnp.float32),
      w_dw.astype(cd), b_dw.reshape(1, H).astype(cd),
      w2.astype(cd), b2.reshape(1, C).astype(jnp.float32))


class FastLeFFPallas:
    """JAX/Pallas port of the PyTorch FastLeFF module (inference forward)."""

    def __init__(self, dim=32, hidden_dim=128, drop=0.0, key=None,
                 dtype=jnp.float32, compute_dtype=None):
        self.dim = dim
        self.hidden_dim = hidden_dim
        self.compute_dtype = (_default_compute_dtype() if compute_dtype is None
                              else jnp.dtype(compute_dtype))
        if key is None:
            key = jax.random.PRNGKey(0)
        k1, k2, k3, k4, k5, k6 = jax.random.split(key, 6)

        # PyTorch-style uniform(-1/sqrt(fan_in), 1/sqrt(fan_in)) init.
        b_lin1 = 1.0 / (dim ** 0.5)
        b_conv = 1.0 / (3.0 ** 0.5)          # depthwise conv fan_in = 1 * kernel_size
        b_lin2 = 1.0 / (hidden_dim ** 0.5)

        # Stored pre-transposed so the kernel computes x @ W.
        self.w1 = jax.random.uniform(k1, (dim, hidden_dim), dtype, -b_lin1, b_lin1)
        self.b1 = jax.random.uniform(k2, (hidden_dim,), dtype, -b_lin1, b_lin1)
        # Depthwise taps stored (3, hidden): w_dw[k, c] == torch_conv.weight[c, 0, k].
        self.w_dw = jax.random.uniform(k3, (3, hidden_dim), dtype, -b_conv, b_conv)
        self.b_dw = jax.random.uniform(k4, (hidden_dim,), dtype, -b_conv, b_conv)
        self.w2 = jax.random.uniform(k5, (hidden_dim, dim), dtype, -b_lin2, b_lin2)
        self.b2 = jax.random.uniform(k6, (dim,), dtype, -b_lin2, b_lin2)

    def __call__(self, x, tile_n=None):
        B, N, C = x.shape
        assert C == self.dim
        return fastleff_forward(x, self.w1, self.b1, self.w_dw, self.b_dw,
                                self.w2, self.b2,
                                compute_dtype=self.compute_dtype, tile_n=tile_n)


def _reference_forward(x, w1, b1, w_dw, b_dw, w2, b2, compute_dtype=jnp.float32):
    """Plain-JAX reference mirroring the kernel's compute-dtype path."""
    cd = jnp.dtype(compute_dtype)
    h = jnp.dot(x.astype(cd), w1.astype(cd),
                preferred_element_type=jnp.float32) + b1
    h = _gelu_tanh(h.astype(cd))
    hp = jnp.pad(h, ((0, 0), (1, 1), (0, 0)))
    conv = (hp[:, :-2, :] * w_dw[0].astype(cd)
            + hp[:, 1:-1, :] * w_dw[1].astype(cd)
            + hp[:, 2:, :] * w_dw[2].astype(cd)
            + b_dw.astype(cd))
    a = _gelu_tanh(conv)
    out = jnp.dot(a, w2.astype(cd), preferred_element_type=jnp.float32) + b2
    return out.astype(x.dtype)


if __name__ == "__main__":
    dim, hidden = 32, 128
    key = jax.random.PRNGKey(0)
    kx1, kx2, kp = jax.random.split(key, 3)

    mod = FastLeFFPallas(dim=dim, hidden_dim=hidden, key=kp)

    # Check 1: small single-tile shape, auto compute dtype (bf16 on v6e/v7x, f32 on v5e).
    x1 = jax.random.normal(kx1, (2, 8, dim), jnp.float32)
    out1 = mod(x1)
    jax.block_until_ready(out1)
    ref1 = _reference_forward(x1, mod.w1, mod.b1, mod.w_dw, mod.b_dw, mod.w2, mod.b2,
                              compute_dtype=mod.compute_dtype)
    assert out1.shape == x1.shape
    err1 = float(jnp.max(jnp.abs(out1 - ref1)))
    assert jnp.allclose(out1, ref1, atol=2e-2, rtol=2e-2), f"check1 max abs err = {err1}"

    # Check 2: multi-tile path (sequence tiling + conv halo rows), f32 compute, tight tol.
    x2 = jax.random.normal(kx2, (2, 64, dim), jnp.float32)
    out2 = fastleff_forward(x2, mod.w1, mod.b1, mod.w_dw, mod.b_dw, mod.w2, mod.b2,
                            compute_dtype=jnp.float32, tile_n=16)
    jax.block_until_ready(out2)
    ref2 = _reference_forward(x2, mod.w1, mod.b1, mod.w_dw, mod.b_dw, mod.w2, mod.b2,
                              compute_dtype=jnp.float32)
    err2 = float(jnp.max(jnp.abs(out2 - ref2)))
    assert jnp.allclose(out2, ref2, atol=1e-4, rtol=1e-4), f"check2 max abs err = {err2}"

    print("KERNEL_OK")
</pallas_src>

<mosaic_0001>
module attributes {stable_mosaic.version = 11 : i64} {
  func.func @kernel(%arg0: i32, %arg1: i32, %arg2: memref<1x8x32xf32, #tpu.memory_space<vmem>>, %arg3: memref<32x128xf32, #tpu.memory_space<vmem>>, %arg4: memref<1x128xf32, #tpu.memory_space<vmem>>, %arg5: memref<3x128xf32, #tpu.memory_space<vmem>>, %arg6: memref<1x128xf32, #tpu.memory_space<vmem>>, %arg7: memref<128x32xf32, #tpu.memory_space<vmem>>, %arg8: memref<1x32xf32, #tpu.memory_space<vmem>>, %arg9: memref<1x8x32xf32, #tpu.memory_space<vmem>>, %arg10: memref<10x128xf32, #tpu.memory_space<vmem>>) attributes {dimension_semantics = [#tpu.dimension_semantics<parallel>, #tpu.dimension_semantics<parallel>], iteration_bounds = array<i64: 2, 1>, scalar_prefetch = 0 : i64, scratch_operands = 1 : i64, tpu.core_type = #tpu.core_type<tc>, window_params = [{transform_indices = @transform_0, window_bounds = array<i64: 1, 8, 32>}, {pipeline_mode = #tpu.pipeline_mode<synchronous>, transform_indices = @transform_1, window_bounds = array<i64: 32, 128>}, {pipeline_mode = #tpu.pipeline_mode<synchronous>, transform_indices = @transform_2, window_bounds = array<i64: 1, 128>}, {pipeline_mode = #tpu.pipeline_mode<synchronous>, transform_indices = @transform_3, window_bounds = array<i64: 3, 128>}, {pipeline_mode = #tpu.pipeline_mode<synchronous>, transform_indices = @transform_4, window_bounds = array<i64: 1, 128>}, {pipeline_mode = #tpu.pipeline_mode<synchronous>, transform_indices = @transform_5, window_bounds = array<i64: 128, 32>}, {pipeline_mode = #tpu.pipeline_mode<synchronous>, transform_indices = @transform_6, window_bounds = array<i64: 1, 32>}, {transform_indices = @transform_7, window_bounds = array<i64: 1, 8, 32>}]} {
    %c8_i32 = arith.constant 8 : i32
    %0 = arith.muli %arg1, %c8_i32 : i32
    %1 = tpu.assume_multiple %0, 8 : i32
    %c0 = arith.constant 0 : index
    %2 = arith.index_cast %1 : i32 to index
    %c0_0 = arith.constant 0 : index
    %3 = vector.load %arg2[%c0, %2, %c0_0] : memref<1x8x32xf32, #tpu.memory_space<vmem>>, vector<1x8x32xf32>
    %4 = vector.shape_cast %3 : vector<1x8x32xf32> to vector<8x32xf32>
    %c0_1 = arith.constant 0 : index
    %c0_2 = arith.constant 0 : index
    %5 = vector.load %arg3[%c0_1, %c0_2] : memref<32x128xf32, #tpu.memory_space<vmem>>, vector<32x128xf32>
    %cst = arith.constant dense<0.000000e+00> : vector<8x128xf32>
    %6 = tpu.matmul %4, %5, %cst {dimension_numbers = #tpu.dot_dimension_numbers<[1], [0], [0], [1], [0, 0, 1, 1], [], []>} : vector<8x32xf32>, vector<32x128xf32>, vector<8x128xf32> -> vector<8x128xf32>
    %c0_3 = arith.constant 0 : index
    %c0_4 = arith.constant 0 : index
    %7 = vector.load %arg4[%c0_3, %c0_4] : memref<1x128xf32, #tpu.memory_space<vmem>>, vector<1x128xf32>
    %8 = vector.broadcast %7 : vector<1x128xf32> to vector<8x128xf32>
    %9 = arith.addf %6, %8 : vector<8x128xf32>
    %10 = arith.mulf %9, %9 : vector<8x128xf32>
    %cst_5 = arith.constant 0.0356774069 : f32
    %11 = vector.broadcast %cst_5 : f32 to vector<8x128xf32>
    %12 = arith.mulf %11, %10 : vector<8x128xf32>
    %cst_6 = arith.constant 0.797884583 : f32
    %13 = vector.broadcast %cst_6 : f32 to vector<8x128xf32>
    %14 = arith.addf %13, %12 : vector<8x128xf32>
    %15 = arith.mulf %9, %14 : vector<8x128xf32>
    %cst_7 = arith.constant 5.000000e-01 : f32
    %16 = vector.broadcast %cst_7 : f32 to vector<8x128xf32>
    %17 = arith.mulf %16, %9 : vector<8x128xf32>
    %18 = math.tanh %15 : vector<8x128xf32>
    %19 = arith.mulf %17, %18 : vector<8x128xf32>
    %20 = arith.addf %17, %19 : vector<8x128xf32>
    %c1_i32 = arith.constant 1 : i32
    %21 = arith.subi %1, %c1_i32 : i32
    %c0_i32 = arith.constant 0 : i32
    %22 = arith.maxsi %21, %c0_i32 : i32
    %c8_i32_8 = arith.constant 8 : i32
    %23 = arith.addi %1, %c8_i32_8 : i32
    %c7_i32 = arith.constant 7 : i32
    %24 = arith.minsi %23, %c7_i32 : i32
    %c0_9 = arith.constant 0 : index
    %25 = arith.index_cast %22 : i32 to index
    %c0_10 = arith.constant 0 : index
    %26 = vector.load %arg2[%c0_9, %25, %c0_10] : memref<1x8x32xf32, #tpu.memory_space<vmem>>, vector<1x1x32xf32>
    %27 = vector.shape_cast %26 : vector<1x1x32xf32> to vector<1x32xf32>
    %c0_11 = arith.constant 0 : index
    %c0_12 = arith.constant 0 : index
    %28 = vector.load %arg3[%c0_11, %c0_12] : memref<32x128xf32, #tpu.memory_space<vmem>>, vector<32x128xf32>
    %cst_13 = arith.constant dense<0.000000e+00> : vector<1x128xf32>
    %29 = tpu.matmul %27, %28, %cst_13 {dimension_numbers = #tpu.dot_dimension_numbers<[1], [0], [0], [1], [0, 0, 1, 1], [], []>} : vector<1x32xf32>, vector<32x128xf32>, vector<1x128xf32> -> vector<1x128xf32>
    %c0_14 = arith.constant 0 : index
    %c0_15 = arith.constant 0 : index
    %30 = vector.load %arg4[%c0_14, %c0_15] : memref<1x128xf32, #tpu.memory_space<vmem>>, vector<1x128xf32>
    %31 = arith.addf %29, %30 : vector<1x128xf32>
    %32 = arith.mulf %31, %31 : vector<1x128xf32>
    %cst_16 = arith.constant 0.0356774069 : f32
    %33 = vector.broadcast %cst_16 : f32 to vector<1x128xf32>
    %34 = arith.mulf %33, %32 : vector<1x128xf32>
    %cst_17 = arith.constant 0.797884583 : f32
    %35 = vector.broadcast %cst_17 : f32 to vector<1x128xf32>
    %36 = arith.addf %35, %34 : vector<1x128xf32>
    %37 = arith.mulf %31, %36 : vector<1x128xf32>
    %cst_18 = arith.constant 5.000000e-01 : f32
    %38 = vector.broadcast %cst_18 : f32 to vector<1x128xf32>
    %39 = arith.mulf %38, %31 : vector<1x128xf32>
    %40 = math.tanh %37 : vector<1x128xf32>
    %41 = arith.mulf %39, %40 : vector<1x128xf32>
    %42 = arith.addf %39, %41 : vector<1x128xf32>
    %c0_19 = arith.constant 0 : index
    %43 = arith.index_cast %24 : i32 to index
    %c0_20 = arith.constant 0 : index
    %44 = vector.load %arg2[%c0_19, %43, %c0_20] : memref<1x8x32xf32, #tpu.memory_space<vmem>>, vector<1x1x32xf32>
    %45 = vector.shape_cast %44 : vector<1x1x32xf32> to vector<1x32xf32>
    %c0_21 = arith.constant 0 : index
    %c0_22 = arith.constant 0 : index
    %46 = vector.load %arg3[%c0_21, %c0_22] : memref<32x128xf32, #tpu.memory_space<vmem>>, vector<32x128xf32>
    %cst_23 = arith.constant dense<0.000000e+00> : vector<1x128xf32>
    %47 = tpu.matmul %45, %46, %cst_23 {dimension_numbers = #tpu.dot_dimension_numbers<[1], [0], [0], [1], [0, 0, 1, 1], [], []>} : vector<1x32xf32>, vector<32x128xf32>, vector<1x128xf32> -> vector<1x128xf32>
    %c0_24 = arith.constant 0 : index
    %c0_25 = arith.constant 0 : index
    %48 = vector.load %arg4[%c0_24, %c0_25] : memref<1x128xf32, #tpu.memory_space<vmem>>, vector<1x128xf32>
    %49 = arith.addf %47, %48 : vector<1x128xf32>
    %50 = arith.mulf %49, %49 : vector<1x128xf32>
    %cst_26 = arith.constant 0.0356774069 : f32
    %51 = vector.broadcast %cst_26 : f32 to vector<1x128xf32>
    %52 = arith.mulf %51, %50 : vector<1x128xf32>
    %cst_27 = arith.constant 0.797884583 : f32
    %53 = vector.broadcast %cst_27 : f32 to vector<1x128xf32>
    %54 = arith.addf %53, %52 : vector<1x128xf32>
    %55 = arith.mulf %49, %54 : vector<1x128xf32>
    %cst_28 = arith.constant 5.000000e-01 : f32
    %56 = vector.broadcast %cst_28 : f32 to vector<1x128xf32>
    %57 = arith.mulf %56, %49 : vector<1x128xf32>
    %58 = math.tanh %55 : vector<1x128xf32>
    %59 = arith.mulf %57, %58 : vector<1x128xf32>
    %60 = arith.addf %57, %59 : vector<1x128xf32>
    %c0_29 = arith.constant 0 : index
    %c0_30 = arith.constant 0 : index
    %61 = vector.load %arg10[%c0_29, %c0_30] : memref<10x128xf32, #tpu.memory_space<vmem>>, vector<1x128xf32>
    tpu.vector_store %arg10[%c0_29, %c0_30], %42 {strides = array<i32>} : memref<10x128xf32, #tpu.memory_space<vmem>>, vector<1x128xf32>,
    %c1 = arith.constant 1 : index
    %c0_31 = arith.constant 0 : index
    %62 = vector.load %arg10[%c1, %c0_31] : memref<10x128xf32, #tpu.memory_space<vmem>>, vector<8x128xf32>
    tpu.vector_store %arg10[%c1, %c0_31], %20 {strides = array<i32>} : memref<10x128xf32, #tpu.memory_space<vmem>>, vector<8x128xf32>,
    %c9 = arith.constant 9 : index
    %c0_32 = arith.constant 0 : index
    %63 = vector.load %arg10[%c9, %c0_32] : memref<10x128xf32, #tpu.memory_space<vmem>>, vector<1x128xf32>
    tpu.vector_store %arg10[%c9, %c0_32], %60 {strides = array<i32>} : memref<10x128xf32, #tpu.memory_space<vmem>>, vector<1x128xf32>,
    %c0_i32_33 = arith.constant 0 : i32
    %64 = arith.cmpi eq, %arg1, %c0_i32_33 : i32
    %65 = arith.extui %64 : i1 to i32
    %c0_i32_34 = arith.constant 0 : i32
    %66 = arith.cmpi ne, %65, %c0_i32_34 : i32
    scf.if %66 {
      %cst_59 = arith.constant 0.000000e+00 : f32
      %105 = vector.broadcast %cst_59 : f32 to vector<1x128xf32>
      %c0_60 = arith.constant 0 : index
      %c0_61 = arith.constant 0 : index
      %106 = vector.load %arg10[%c0_60, %c0_61] : memref<10x128xf32, #tpu.memory_space<vmem>>, vector<1x128xf32>
      tpu.vector_store %arg10[%c0_60, %c0_61], %105 {strides = array<i32>} : memref<10x128xf32, #tpu.memory_space<vmem>>, vector<1x128xf32>,
    } else {
    }
    %c0_i32_35 = arith.constant 0 : i32
    %67 = arith.cmpi eq, %arg1, %c0_i32_35 : i32
    %68 = arith.extui %67 : i1 to i32
    %c0_i32_36 = arith.constant 0 : i32
    %69 = arith.cmpi ne, %68, %c0_i32_36 : i32
    scf.if %69 {
      %cst_59 = arith.constant 0.000000e+00 : f32
      %105 = vector.broadcast %cst_59 : f32 to vector<1x128xf32>
      %c9_60 = arith.constant 9 : index
      %c0_61 = arith.constant 0 : index
      %106 = vector.load %arg10[%c9_60, %c0_61] : memref<10x128xf32, #tpu.memory_space<vmem>>, vector<1x128xf32>
      tpu.vector_store %arg10[%c9_60, %c0_61], %105 {strides = array<i32>} : memref<10x128xf32, #tpu.memory_space<vmem>>, vector<1x128xf32>,
    } else {
    }
    %c0_37 = arith.constant 0 : index
    %c0_38 = arith.constant 0 : index
    %70 = vector.load %arg10[%c0_37, %c0_38] : memref<10x128xf32, #tpu.memory_space<vmem>>, vector<8x128xf32>
    %c2 = arith.constant 2 : index
    %c0_39 = arith.constant 0 : index
    %71 = vector.load %arg10[%c2, %c0_39] : memref<10x128xf32, #tpu.memory_space<vmem>>, vector<8x128xf32>
    %c0_40 = arith.constant 0 : index
    %c0_41 = arith.constant 0 : index
    %72 = vector.load %arg5[%c0_40, %c0_41] : memref<3x128xf32, #tpu.memory_space<vmem>>, vector<1x128xf32>
    %73 = vector.broadcast %72 : vector<1x128xf32> to vector<8x128xf32>
    %74 = arith.mulf %70, %73 : vector<8x128xf32>
    %c1_42 = arith.constant 1 : index
    %c0_43 = arith.constant 0 : index
    %75 = vector.load %arg5[%c1_42, %c0_43] : memref<3x128xf32, #tpu.memory_space<vmem>>, vector<1x128xf32>
    %76 = vector.broadcast %75 : vector<1x128xf32> to vector<8x128xf32>
    %77 = arith.mulf %20, %76 : vector<8x128xf32>
    %78 = arith.addf %74, %77 : vector<8x128xf32>
    %c2_44 = arith.constant 2 : index
    %c0_45 = arith.constant 0 : index
    %79 = vector.load %arg5[%c2_44, %c0_45] : memref<3x128xf32, #tpu.memory_space<vmem>>, vector<1x128xf32>
    %80 = vector.broadcast %79 : vector<1x128xf32> to vector<8x128xf32>
    %81 = arith.mulf %71, %80 : vector<8x128xf32>
    %82 = arith.addf %78, %81 : vector<8x128xf32>
    %c0_46 = arith.constant 0 : index
    %c0_47 = arith.constant 0 : index
    %83 = vector.load %arg6[%c0_46, %c0_47] : memref<1x128xf32, #tpu.memory_space<vmem>>, vector<1x128xf32>
    %84 = vector.broadcast %83 : vector<1x128xf32> to vector<8x128xf32>
    %85 = arith.addf %82, %84 : vector<8x128xf32>
    %86 = arith.mulf %85, %85 : vector<8x128xf32>
    %cst_48 = arith.constant 0.0356774069 : f32
    %87 = vector.broadcast %cst_48 : f32 to vector<8x128xf32>
    %88 = arith.mulf %87, %86 : vector<8x128xf32>
    %cst_49 = arith.constant 0.797884583 : f32
    %89 = vector.broadcast %cst_49 : f32 to vector<8x128xf32>
    %90 = arith.addf %89, %88 : vector<8x128xf32>
    %91 = arith.mulf %85, %90 : vector<8x128xf32>
    %cst_50 = arith.constant 5.000000e-01 : f32
    %92 = vector.broadcast %cst_50 : f32 to vector<8x128xf32>
    %93 = arith.mulf %92, %85 : vector<8x128xf32>
    %94 = math.tanh %91 : vector<8x128xf32>
    %95 = arith.mulf %93, %94 : vector<8x128xf32>
    %96 = arith.addf %93, %95 : vector<8x128xf32>
    %c0_51 = arith.constant 0 : index
    %c0_52 = arith.constant 0 : index
    %97 = vector.load %arg7[%c0_51, %c0_52] : memref<128x32xf32, #tpu.memory_space<vmem>>, vector<128x32xf32>
    %cst_53 = arith.constant dense<0.000000e+00> : vector<8x32xf32>
    %98 = tpu.matmul %96, %97, %cst_53 {dimension_numbers = #tpu.dot_dimension_numbers<[1], [0], [0], [1], [0, 0, 1, 1], [], []>} : vector<8x128xf32>, vector<128x32xf32>, vector<8x32xf32> -> vector<8x32xf32>
    %c0_54 = arith.constant 0 : index
    %c0_55 = arith.constant 0 : index
    %99 = vector.load %arg8[%c0_54, %c0_55] : memref<1x32xf32, #tpu.memory_space<vmem>>, vector<1x32xf32>
    %100 = vector.broadcast %99 : vector<1x32xf32> to vector<8x32xf32>
    %101 = arith.addf %98, %100 : vector<8x32xf32>
    %c0_56 = arith.constant 0 : index
    %c0_57 = arith.constant 0 : index
    %c0_58 = arith.constant 0 : index
    %102 = vector.load %arg9[%c0_56, %c0_57, %c0_58] : memref<1x8x32xf32, #tpu.memory_space<vmem>>, vector<1x8x32xf32>
    %103 = vector.shape_cast %102 : vector<1x8x32xf32> to vector<8x32xf32>
    %104 = vector.shape_cast %101 : vector<8x32xf32> to vector<1x8x32xf32>
    tpu.vector_store %arg9[%c0_56, %c0_57, %c0_58], %104 {strides = array<i32>} : memref<1x8x32xf32, #tpu.memory_space<vmem>>, vector<1x8x32xf32>,
    return
  }
  func.func @transform_0(%arg0: i32, %arg1: i32) -> (i32, i32, i32) {
    %c0_i32 = arith.constant 0 : i32
    %c0_i32_0 = arith.constant 0 : i32
    %c0_i32_1 = arith.constant 0 : i32
    return %arg0, %c0_i32, %c0_i32_0 : i32, i32, i32
  }
  func.func @transform_1(%arg0: i32, %arg1: i32) -> (i32, i32) {
    %c0_i32 = arith.constant 0 : i32
    %c0_i32_0 = arith.constant 0 : i32
    %c0_i32_1 = arith.constant 0 : i32
    return %c0_i32, %c0_i32_0 : i32, i32
  }
  func.func @transform_2(%arg0: i32, %arg1: i32) -> (i32, i32) {
    %c0_i32 = arith.constant 0 : i32
    %c0_i32_0 = arith.constant 0 : i32
    %c0_i32_1 = arith.constant 0 : i32
    return %c0_i32, %c0_i32_0 : i32, i32
  }
  func.func @transform_3(%arg0: i32, %arg1: i32) -> (i32, i32) {
    %c0_i32 = arith.constant 0 : i32
    %c0_i32_0 = arith.constant 0 : i32
    %c0_i32_1 = arith.constant 0 : i32
    return %c0_i32, %c0_i32_0 : i32, i32
  }
  func.func @transform_4(%arg0: i32, %arg1: i32) -> (i32, i32) {
    %c0_i32 = arith.constant 0 : i32
    %c0_i32_0 = arith.constant 0 : i32
    %c0_i32_1 = arith.constant 0 : i32
    return %c0_i32, %c0_i32_0 : i32, i32
  }
  func.func @transform_5(%arg0: i32, %arg1: i32) -> (i32, i32) {
    %c0_i32 = arith.constant 0 : i32
    %c0_i32_0 = arith.constant 0 : i32
    %c0_i32_1 = arith.constant 0 : i32
    return %c0_i32, %c0_i32_0 : i32, i32
  }
  func.func @transform_6(%arg0: i32, %arg1: i32) -> (i32, i32) {
    %c0_i32 = arith.constant 0 : i32
    %c0_i32_0 = arith.constant 0 : i32
    %c0_i32_1 = arith.constant 0 : i32
    return %c0_i32, %c0_i32_0 : i32, i32
  }
  func.func @transform_7(%arg0: i32, %arg1: i32) -> (i32, i32, i32) {
    %c0_i32 = arith.constant 0 : i32
    %c0_i32_0 = arith.constant 0 : i32
    return %arg0, %arg1, %c0_i32 : i32, i32, i32
  }
}

</mosaic_0001>

<llo_original>
// kernel: tpu_custom_call.1
$region0: #{tpu_custom_call.1}
  #allocation0 [shape = 'u32[]', space=smem, size = 0x4, offset = 0x4, fixed_abs, tag = 'smem constant byte address 0x4 - core index']
  #allocation1 [shape = 'u32[72,128]{1,0:T(1,128)}', space=vmem, size = 0x9000, scoped, tag = 'internal scratch']
  #allocation2 [shape = 'f32[10,128]{1,0:T(8,128)}', space=vmem, size = 0x2000, scoped, tag = 'scratch operand']
  %s0 = inlined_call_operand.vmem [shape: f32[2,8,32], index: 0, kind: input, shape index: {}]
  %s1 = inlined_call_operand.vmem [shape: f32[32,128], index: 1, kind: input, shape index: {}]
  %s2 = inlined_call_operand.vmem [shape: f32[1,128], index: 2, kind: input, shape index: {}]
  %s3 = inlined_call_operand.vmem [shape: f32[3,128], index: 3, kind: input, shape index: {}]
  %s4 = inlined_call_operand.vmem [shape: f32[1,128], index: 4, kind: input, shape index: {}]
  %s5 = inlined_call_operand.vmem [shape: f32[128,32], index: 5, kind: input, shape index: {}]
  %s6 = inlined_call_operand.vmem [shape: f32[1,32], index: 6, kind: input, shape index: {}]
  %s7 = inlined_call_operand.hbm [shape: f32[2,8,32], index: 7, kind: output, shape index: {}]
  %s8 = sld [smem:[#allocation0]]
  $region65: #{tpu_custom_call.1} parent=0
    _
  %s10 = ssub.s32 1, %s8
  %s11 = scalar_select 0, %s10, %s8
  $region1: #{tpu_custom_call.1} parent=0
    #allocation3 [shape = 'u8[8192]{0}', space=vmem, size = 0x2000, scoped, tag = 'output window, operand 0']
    #allocation4 [shape = 's32[2]{0}', space=sflag, size = 0x8, scoped, tag = 'scoped memory for tpu_custom_call.1']
    %12 = vsyncpa [#allocation4], 0
    %s13 = scalar_lea.sflag [#allocation4], 1
    %14 = vsyncpa %s13, 0
    loop: start=0, step=1, limit=4
    $region2: #{tpu_custom_call.1} parent=1 // loop_pre_header
      _
    $region3: #{tpu_custom_call.1} parent=1 // loop_header
      %s16 = sphi 0, %s20
      %p17 = scmp.ge.s32.totalorder %s16, 4
      %s23 = sphi 0, %s35
      %s24 = sphi 0, %s31
      %s25 = sphi 0, %s23
      %s26 = sphi 0, %s24
      %s27 = sphi 0, %s25
      %s28 = sphi 0, %s26
      %s38 = sphi 0, %s40
      %s41 = sphi 0, %s38
      %s42 = sphi 0, %s41
      %s58 = sphi 0, %s42
      %s62 = sphi 0, %s62
      %s64 = sphi 0, %s62
      %s65 = sphi 0, %s64
      %s79 = sphi 0, %s65
      %s83 = sphi 0, %s83
      %s85 = sphi 0, %s83
      %s86 = sphi 0, %s85
      %s100 = sphi 0, %s86
      %s104 = sphi 0, %s104
      %s106 = sphi 0, %s104
      %s107 = sphi 0, %s106
      %s121 = sphi 0, %s107
      %s125 = sphi 0, %s125
      %s127 = sphi 0, %s125
      %s128 = sphi 0, %s127
      %s142 = sphi 0, %s128
      %s146 = sphi 0, %s146
      %s148 = sphi 0, %s146
      %s149 = sphi 0, %s148
      %s163 = sphi 0, %s149
      %s167 = sphi 0, %s167
      %s169 = sphi 0, %s167
      %s170 = sphi 0, %s169
      %s184 = sphi 0, %s170
      %s192 = sphi 0, %s194
      %s195 = sphi 0, %s192
      %s196 = sphi 0, %s195
      %s212 = sphi 0, %s196
    $region4: #{tpu_custom_call.1} parent=1 // loop_header_branch
      %19 = sbr.rel (%p17) target = $region8
    $region5: #{tpu_custom_call.1} parent=1 // loop_body
      %s21 = ssub.s32 %s16, 1
      %s22 = ssub.s32 %s16, 2
      %s29 = sadd.s32 1, %s24
      %p30 = scmp.ge.s32.totalorder %s29, 1
      %s31 = scalar_select %p30, 0, %s29
      %s32 = sadd.s32 1, %s23
      %s33 = scalar_select %p30, %s32, %s23
      %p34 = scmp.ge.s32.totalorder %s33, 2
      %s35 = scalar_select %p34, 0, %s33
      %s36 = ssub.s32 %s23, %s35
      %p37 = scmp.eq.s32.totalorder %s36, 0
      %s39 = sadd.s32 %s38, 1
      %s40 = scalar_select %p37, %s38, %s39
      %p43 = pneg %p37
      %p44 = scmp.eq.s32.totalorder %s16, 1
      %p45 = por %p43, %p44
      %p46 = scmp.ne.s32.totalorder %s38, %s41
      %p47 = scmp.eq.s32.totalorder %s16, 0
      %p48 = por %p46, %p47
      %p49 = scmp.ne.s32.totalorder %s38, %s41
      %p50 = scmp.eq.s32.totalorder %s21, 1
      %p51 = por %p49, %p50
      %p52 = scmp.ne.s32.totalorder %s41, %s42
      %p53 = scmp.eq.s32.totalorder %s21, 0
      %p54 = por %p52, %p53
      %p55 = scmp.ne.s32.totalorder %s41, %s42
      %p56 = scmp.eq.s32.totalorder %s22, 1
      %p57 = por %p55, %p56
      %p59 = scmp.ne.s32.totalorder %s42, %s58
      %p60 = scmp.eq.s32.totalorder %s22, 0
      %p61 = por %p59, %p60
      %s63 = sadd.s32 %s62, 1
      %p66 = scmp.eq.s32.totalorder %s16, 1
      %p67 = scmp.ne.s32.totalorder %s62, %s64
      %p68 = scmp.eq.s32.totalorder %s16, 0
      %p69 = por %p67, %p68
      %p70 = scmp.ne.s32.totalorder %s62, %s64
      %p71 = scmp.eq.s32.totalorder %s21, 1
      %p72 = por %p70, %p71
      %p73 = scmp.ne.s32.totalorder %s64, %s65
      %p74 = scmp.eq.s32.totalorder %s21, 0
      %p75 = por %p73, %p74
      %p76 = scmp.ne.s32.totalorder %s64, %s65
      %p77 = scmp.eq.s32.totalorder %s22, 1
      %p78 = por %p76, %p77
      %p80 = scmp.ne.s32.totalorder %s65, %s79
      %p81 = scmp.eq.s32.totalorder %s22, 0
      %p82 = por %p80, %p81
      %s84 = sadd.s32 %s83, 1
      %p87 = scmp.eq.s32.totalorder %s16, 1
      %p88 = scmp.ne.s32.totalorder %s83, %s85
      %p89 = scmp.eq.s32.totalorder %s16, 0
      %p90 = por %p88, %p89
      %p91 = scmp.ne.s32.totalorder %s83, %s85
      %p92 = scmp.eq.s32.totalorder %s21, 1
      %p93 = por %p91, %p92
      %p94 = scmp.ne.s32.totalorder %s85, %s86
      %p95 = scmp.eq.s32.totalorder %s21, 0
      %p96 = por %p94, %p95
      %p97 = scmp.ne.s32.totalorder %s85, %s86
      %p98 = scmp.eq.s32.totalorder %s22, 1
      %p99 = por %p97, %p98
      %p101 = scmp.ne.s32.totalorder %s86, %s100
      %p102 = scmp.eq.s32.totalorder %s22, 0
      %p103 = por %p101, %p102
      %s105 = sadd.s32 %s104, 1
      %p108 = scmp.eq.s32.totalorder %s16, 1
      %p109 = scmp.ne.s32.totalorder %s104, %s106
      %p110 = scmp.eq.s32.totalorder %s16, 0
      %p111 = por %p109, %p110
      %p112 = scmp.ne.s32.totalorder %s104, %s106
      %p113 = scmp.eq.s32.totalorder %s21, 1
      %p114 = por %p112, %p113
      %p115 = scmp.ne.s32.totalorder %s106, %s107
      %p116 = scmp.eq.s32.totalorder %s21, 0
      %p117 = por %p115, %p116
      %p118 = scmp.ne.s32.totalorder %s106, %s107
      %p119 = scmp.eq.s32.totalorder %s22, 1
      %p120 = por %p118, %p119
      %p122 = scmp.ne.s32.totalorder %s107, %s121
      %p123 = scmp.eq.s32.totalorder %s22, 0
      %p124 = por %p122, %p123
      %s126 = sadd.s32 %s125, 1
      %p129 = scmp.eq.s32.totalorder %s16, 1
      %p130 = scmp.ne.s32.totalorder %s125, %s127
      %p131 = scmp.eq.s32.totalorder %s16, 0
      %p132 = por %p130, %p131
      %p133 = scmp.ne.s32.totalorder %s125, %s127
      %p134 = scmp.eq.s32.totalorder %s21, 1
      %p135 = por %p133, %p134
      %p136 = scmp.ne.s32.totalorder %s127, %s128
      %p137 = scmp.eq.s32.totalorder %s21, 0
      %p138 = por %p136, %p137
      %p139 = scmp.ne.s32.totalorder %s127, %s128
      %p140 = scmp.eq.s32.totalorder %s22, 1
      %p141 = por %p139, %p140
      %p143 = scmp.ne.s32.totalorder %s128, %s142
      %p144 = scmp.eq.s32.totalorder %s22, 0
      %p145 = por %p143, %p144
      %s147 = sadd.s32 %s146, 1
      %p150 = scmp.eq.s32.totalorder %s16, 1
      %p151 = scmp.ne.s32.totalorder %s146, %s148
      %p152 = scmp.eq.s32.totalorder %s16, 0
      %p153 = por %p151, %p152
      %p154 = scmp.ne.s32.totalorder %s146, %s148
      %p155 = scmp.eq.s32.totalorder %s21, 1
      %p156 = por %p154, %p155
      %p157 = scmp.ne.s32.totalorder %s148, %s149
      %p158 = scmp.eq.s32.totalorder %s21, 0
      %p159 = por %p157, %p158
      %p160 = scmp.ne.s32.totalorder %s148, %s149
      %p161 = scmp.eq.s32.totalorder %s22, 1
      %p162 = por %p160, %p161
      %p164 = scmp.ne.s32.totalorder %s149, %s163
      %p165 = scmp.eq.s32.totalorder %s22, 0
      %p166 = por %p164, %p165
      %s168 = sadd.s32 %s167, 1
      %p171 = scmp.eq.s32.totalorder %s16, 1
      %p172 = scmp.ne.s32.totalorder %s167, %s169
      %p173 = scmp.eq.s32.totalorder %s16, 0
      %p174 = por %p172, %p173
      %p175 = scmp.ne.s32.totalorder %s167, %s169
      %p176 = scmp.eq.s32.totalorder %s21, 1
      %p177 = por %p175, %p176
      %p178 = scmp.ne.s32.totalorder %s169, %s170
      %p179 = scmp.eq.s32.totalorder %s21, 0
      %p180 = por %p178, %p179
      %p181 = scmp.ne.s32.totalorder %s169, %s170
      %p182 = scmp.eq.s32.totalorder %s22, 1
      %p183 = por %p181, %p182
      %p185 = scmp.ne.s32.totalorder %s170, %s184
      %p186 = scmp.eq.s32.totalorder %s22, 0
      %p187 = por %p185, %p186
      %s188 = ssub.s32 %s23, %s35
      %s189 = ssub.s32 %s24, %s31
      %s190 = sor.u32 %s188, %s189
      %p191 = scmp.eq.s32.totalorder %s190, 0
      %s193 = sadd.s32 %s192, 1
      %s194 = scalar_select %p191, %s192, %s193
      %p197 = pneg %p191
      %p198 = scmp.eq.s32.totalorder %s16, 1
      %p199 = por %p197, %p198
      %p200 = scmp.ne.s32.totalorder %s192, %s195
      %p201 = scmp.eq.s32.totalorder %s16, 0
      %p202 = por %p200, %p201
      %p203 = scmp.ne.s32.totalorder %s192, %s195
      %p204 = scmp.eq.s32.totalorder %s21, 1
      %p205 = por %p203, %p204
      %p206 = scmp.ne.s32.totalorder %s195, %s196
      %p207 = scmp.eq.s32.totalorder %s21, 0
      %p208 = por %p206, %p207
      %p209 = scmp.ne.s32.totalorder %s195, %s196
      %p210 = scmp.eq.s32.totalorder %s22, 1
      %p211 = por %p209, %p210
      %p213 = scmp.ne.s32.totalorder %s196, %s212
      %p214 = scmp.eq.s32.totalorder %s22, 0
      %p215 = por %p213, %p214
      %p216 = scmp.le.s32.totalorder 1, %s16
      %p217 = scmp.lt.s32.totalorder %s16, 3
      %p218 = pnand %p216, %p217
      %p219 = pneg %p218
      // Predicated region
      $region9: #{tpu_custom_call.1} parent=5 // pred_check
        _
      $region10: #{tpu_custom_call.1} parent=5 // pred_check_branch
        %221 = sbr.rel (%p218) target = $region12
      $region11: #{tpu_custom_call.1} parent=5 // pred_region
        %s222 = ssub.s32 %s16, 1
        // Predicated region
        $region13: #{tpu_custom_call.1} parent=11 // pred_check
          %p223 = pneg %p75
        $region14: #{tpu_custom_call.1} parent=11 // pred_check_branch
          %225 = sbr.rel (%p223) target = $region16
        $region15: #{tpu_custom_call.1} parent=11 // pred_region
          _
        $region16: #{tpu_custom_call.1} parent=11 // pred_fallthru
          _
        // Predicated region
        $region17: #{tpu_custom_call.1} parent=11 // pred_check
          %p226 = pneg %p96
        $region18: #{tpu_custom_call.1} parent=11 // pred_check_branch
          %228 = sbr.rel (%p226) target = $region20
        $region19: #{tpu_custom_call.1} parent=11 // pred_region
          _
        $region20: #{tpu_custom_call.1} parent=11 // pred_fallthru
          _
        // Predicated region
        $region21: #{tpu_custom_call.1} parent=11 // pred_check
          %p229 = pneg %p117
        $region22: #{tpu_custom_call.1} parent=11 // pred_check_branch
          %231 = sbr.rel (%p229) target = $region24
        $region23: #{tpu_custom_call.1} parent=11 // pred_region
          _
        $region24: #{tpu_custom_call.1} parent=11 // pred_fallthru
          _
        // Predicated region
        $region25: #{tpu_custom_call.1} parent=11 // pred_check
          %p232 = pneg %p138
        $region26: #{tpu_custom_call.1} parent=11 // pred_check_branch
          %234 = sbr.rel (%p232) target = $region28
        $region27: #{tpu_custom_call.1} parent=11 // pred_region
          _
        $region28: #{tpu_custom_call.1} parent=11 // pred_fallthru
          _
        // Predicated region
        $region29: #{tpu_custom_call.1} parent=11 // pred_check
          %p235 = pneg %p159
        $region30: #{tpu_custom_call.1} parent=11 // pred_check_branch
          %237 = sbr.rel (%p235) target = $region32
        $region31: #{tpu_custom_call.1} parent=11 // pred_region
          _
        $region32: #{tpu_custom_call.1} parent=11 // pred_fallthru
          _
        // Predicated region
        $region33: #{tpu_custom_call.1} parent=11 // pred_check
          %p238 = pneg %p180
        $region34: #{tpu_custom_call.1} parent=11 // pred_check_branch
          %240 = sbr.rel (%p238) target = $region36
        $region35: #{tpu_custom_call.1} parent=11 // pred_region
          _
        $region36: #{tpu_custom_call.1} parent=11 // pred_fallthru
          _
      $region12: #{tpu_custom_call.1} parent=5 // pred_fallthru
        _
      %p241 = scmp.lt.s32.totalorder %s16, 2
      // Predicated region
      $region37: #{tpu_custom_call.1} parent=5 // pred_check
        %p242 = pneg %p241
      $region38: #{tpu_custom_call.1} parent=5 // pred_check_branch
        %244 = sbr.rel (%p242) target = $region40
      $region39: #{tpu_custom_call.1} parent=5 // pred_region
        // Predicated region
        $region41: #{tpu_custom_call.1} parent=39 // pred_check
          %p245 = pneg %p48
        $region42: #{tpu_custom_call.1} parent=39 // pred_check_branch
          %247 = sbr.rel (%p245) target = $region44
        $region43: #{tpu_custom_call.1} parent=39 // pred_region
          %p248 = scmp.lt.s32.totalorder %s23, 1
          %s249 = scalar_select %p248, %s23, 1
          %s250 = smul.addr %s249, 8
          %s251 = scalar_lea.vmem %s0, %s250
        $region44: #{tpu_custom_call.1} parent=39 // pred_fallthru
          _
      $region40: #{tpu_custom_call.1} parent=5 // pred_fallthru
        _
      %p252 = scmp.le.s32.totalorder 1, %s16
      %p253 = scmp.lt.s32.totalorder %s16, 3
      %p254 = pnand %p252, %p253
      %p255 = pneg %p254
      // Predicated region
      $region45: #{tpu_custom_call.1} parent=5 // pred_check
        _
      $region46: #{tpu_custom_call.1} parent=5 // pred_check_branch
        %257 = sbr.rel (%p254) target = $region48
      $region47: #{tpu_custom_call.1} parent=5 // pred_region
        %s258 = ssub.s32 %s16, 1
        %p259 = scmp.lt.s32.totalorder %s25, 1
        %s260 = scalar_select %p259, %s25, 1
        %s261 = smul.addr %s260, 8
        %s262 = scalar_lea.vmem %s0, %s261
        %p263 = pneg %p54
        %p264 = pneg %p51
        %p265 = pneg %p75
        %p266 = pneg %p72
        %p267 = pneg %p96
        %p268 = pneg %p93
        %p269 = pneg %p117
        %p270 = pneg %p114
        %p271 = pneg %p138
        %p272 = pneg %p135
        %p273 = pneg %p159
        %p274 = pneg %p156
        %p275 = pneg %p180
        %p276 = pneg %p177
        %p277 = pneg %p208
        %p278 = pneg %p205
        %s279 = sand.u32 %s195, 1
        %s280 = scalar_lea.sflag [#allocation4], %s279
        %s281 = sand.u32 %s195, 1
        %s282 = smul.addr %s281, 8
        %s283 = scalar_lea.vmem [#allocation3], %s282
        %p284 = scmp.lt.s32.totalorder %s25, 1
        %s285 = scalar_select %p284, %s25, 1
        %s286 = smul.addr %s285, 8
        %s287 = scalar_lea.vmem %s0, %s286
        %s288 = smul.u32 %s26, 8
        %s289 = scalar_lea.vmem %s287, %s288
        %v290 = vld [vmem:[%s289] sm:$0xff]
        %v291 = vld [vmem:[%s1] sm:$0xff]
        %v292 = vld [vmem:[%s1 + $0x8] sm:$0xff]
        %v293 = vld [vmem:[%s1 + $0x10] sm:$0xff]
        %v294 = vld [vmem:[%s1 + $0x18] sm:$0xff]
        %v295 = vld [vmem:[%s2] sm:$0x1]
        %v297 = vperm.slane %v295, 0
        %vm299 = vcmask 261120
        %v301 = vsel %vm299, %v290, 0
        %303 = vmatpush.msra.mxu0 0.0
        %304 = vmatpush.msra.mxu0 0.0
        %305 = vmatpush.msra.mxu0 0.0
        %306 = vmatpush.msra.mxu0 0.0
        %307 = vmatpush.msra.mxu0 0.0
        %308 = vmatpush.msra.mxu0 0.0
        %309 = vmatpush.msra.mxu0 0.0
        %310 = vmatpush.msra.mxu0 0.0
        %311 = vmatpush.msra.mxu0 0.0
        %312 = vmatpush.msra.mxu0 0.0
        %313 = vmatpush.msra.mxu0 0.0
        %314 = vmatpush.msra.mxu0 0.0
        %315 = vmatpush.msra.mxu0 %v294
        %316 = vmatpush.msra.mxu0 %v293
        %317 = vmatpush.msra.mxu0 %v292
        %318 = vmatpush.msra.mxu0 %v291
        %319 = vmatmul.f32.gmra.mxu0 %v301
        %v320 = vpop.f32.mrf.mxu0
        %v321 = vadd.f32 %v297, %v320
        %322 = vdwg.mxu0
        %v323 = vmul.f32 %v321, %v321
        %v324 = vmul.f32 %v323, 0.035677407
        %v325 = vadd.f32 %v324, 0.7978846
        %v326 = vmul.f32 %v321, %v325
        %v327 = vmul.f32 %v321, 0.5
        %v328 = vtanh.pop %v326
        %v329 = vmul.f32 %v327, %v328
        %v330 = vadd.f32 %v327, %v329
        %s331 = ssub.s32 %s288, 1
        %p332 = scmp.gt.s32.totalorder %s331, 0
        %s333 = scalar_select %p332, %s331, 0
        %s334 = sadd.s32 %s288, 8
        %p335 = scmp.lt.s32.totalorder %s334, 7
        %s336 = scalar_select %p335, %s334, 7
        %s337 = scalar_lea.vmem %s287, %s333
        %v338 = vld [vmem:[%s337] sm:$0x1]
        %v340 = vsel %vm299, %v338, 0
        %342 = vmatpush.msra.mxu0 0.0
        %343 = vmatpush.msra.mxu0 0.0
        %344 = vmatpush.msra.mxu0 0.0
        %345 = vmatpush.msra.mxu0 0.0
        %346 = vmatpush.msra.mxu0 0.0
        %347 = vmatpush.msra.mxu0 0.0
        %348 = vmatpush.msra.mxu0 0.0
        %349 = vmatpush.msra.mxu0 0.0
        %350 = vmatpush.msra.mxu0 0.0
        %351 = vmatpush.msra.mxu0 0.0
        %352 = vmatpush.msra.mxu0 0.0
        %353 = vmatpush.msra.mxu0 0.0
        %354 = vmatpush.msra.mxu0 %v294
        %355 = vmatpush.msra.mxu0 %v293
        %356 = vmatpush.msra.mxu0 %v292
        %357 = vmatpush.msra.mxu0 %v291
        %358 = vmatmul.f32.gmra.mxu0 %v340
        %v359 = vpop.f32.mrf.mxu0
        %v360 = vadd.f32 %v295, %v359
        %361 = vdwg.mxu0
        %v362 = vmul.f32 %v360, %v360
        %v363 = vmul.f32 %v362, 0.035677407
        %v364 = vadd.f32 %v363, 0.7978846
        %v365 = vmul.f32 %v360, %v364
        %v366 = vmul.f32 %v360, 0.5
        %v367 = vtanh.pop %v365
        %v368 = vmul.f32 %v366, %v367
        %v369 = vadd.f32 %v366, %v368
        %s370 = scalar_lea.vmem %s287, %s336
        %v371 = vld [vmem:[%s370] sm:$0x1]
        %v373 = vsel %vm299, %v371, 0
        %375 = vmatpush.msra.mxu0 0.0
        %376 = vmatpush.msra.mxu0 0.0
        %377 = vmatpush.msra.mxu0 0.0
        %378 = vmatpush.msra.mxu0 0.0
        %379 = vmatpush.msra.mxu0 0.0
        %380 = vmatpush.msra.mxu0 0.0
        %381 = vmatpush.msra.mxu0 0.0
        %382 = vmatpush.msra.mxu0 0.0
        %383 = vmatpush.msra.mxu0 0.0
        %384 = vmatpush.msra.mxu0 0.0
        %385 = vmatpush.msra.mxu0 0.0
        %386 = vmatpush.msra.mxu0 0.0
        %387 = vmatpush.msra.mxu0 %v294
        %388 = vmatpush.msra.mxu0 %v293
        %389 = vmatpush.msra.mxu0 %v292
        %390 = vmatpush.msra.mxu0 %v291
        %391 = vmatmul.f32.gmra.mxu0 %v373
        %v392 = vpop.f32.mrf.mxu0
        %v393 = vadd.f32 %v295, %v392
        %394 = vdwg.mxu0
        %v395 = vmul.f32 %v393, %v393
        %v396 = vmul.f32 %v395, 0.035677407
        %v397 = vadd.f32 %v396, 0.7978846
        %v398 = vmul.f32 %v393, %v397
        %v399 = vmul.f32 %v393, 0.5
        %v400 = vtanh.pop %v398
        %v401 = vmul.f32 %v399, %v400
        %v402 = vadd.f32 %v399, %v401
        %403 = vst [vmem:[#allocation2] sm:$0x1] %v369
        %404 = vst [vmem:[#allocation2 + $0x1] sm:$0xff] %v330
        %405 = vst [vmem:[#allocation2 + $0x9] sm:$0x1] %v402
        %p406 = scmp.eq.s32.totalorder %s26, 0
        // Predicated region
        $region49: #{tpu_custom_call.1} parent=47 // pred_check
          %p407 = pneg %p406
        $region50: #{tpu_custom_call.1} parent=47 // pred_check_branch
          %409 = sbr.rel (%p407) target = $region52
        $region51: #{tpu_custom_call.1} parent=47 // pred_region
          %410 = vst [vmem:[#allocation2] sm:$0x1] 0.0
          %411 = vst [vmem:[#allocation2 + $0x9] sm:$0x1] 0.0
        $region52: #{tpu_custom_call.1} parent=47 // pred_fallthru
          _
        %v412 = vld [vmem:[#allocation2] sm:$0xff]
        %v413 = vld [vmem:[#allocation2 + $0x2] sm:$0xff]
        %v414 = vld [vmem:[%s3] sm:$0x1]
        %v415 = vperm.slane %v414, 0
        %v416 = vmul.f32 %v412, %v415
        %v417 = vld [vmem:[%s3 + $0x1] sm:$0x1]
        %v418 = vperm.slane %v417, 0
        %v419 = vmul.f32 %v330, %v418
        %v420 = vadd.f32 %v416, %v419
        %v421 = vld [vmem:[%s3 + $0x2] sm:$0x1]
        %v422 = vperm.slane %v421, 0
        %v423 = vmul.f32 %v413, %v422
        %v424 = vadd.f32 %v420, %v423
        %v425 = vld [vmem:[%s4] sm:$0x1]
        %v427 = vperm.slane %v425, 0
        %v429 = vadd.f32 %v424, %v427
        %v430 = vmul.f32 %v429, %v429
        %v431 = vmul.f32 %v430, 0.035677407
        %v432 = vadd.f32 %v431, 0.7978846
        %v433 = vmul.f32 %v429, %v432
        %v434 = vmul.f32 %v429, 0.5
        %v435 = vtanh.pop %v433
        %v436 = vmul.f32 %v434, %v435
        %v437 = vadd.f32 %v434, %v436
        %v438 = vld [vmem:[%s5] sm:$0xff]
        %v439 = vld [vmem:[%s5 + $0x8] sm:$0xff]
        %v440 = vld [vmem:[%s5 + $0x10] sm:$0xff]
        %v441 = vld [vmem:[%s5 + $0x18] sm:$0xff]
        %v442 = vld [vmem:[%s5 + $0x20] sm:$0xff]
        %v443 = vld [vmem:[%s5 + $0x28] sm:$0xff]
        %v444 = vld [vmem:[%s5 + $0x30] sm:$0xff]
        %v445 = vld [vmem:[%s5 + $0x38] sm:$0xff]
        %v446 = vld [vmem:[%s5 + $0x40] sm:$0xff]
        %v447 = vld [vmem:[%s5 + $0x48] sm:$0xff]
        %v448 = vld [vmem:[%s5 + $0x50] sm:$0xff]
        %v449 = vld [vmem:[%s5 + $0x58] sm:$0xff]
        %v450 = vld [vmem:[%s5 + $0x60] sm:$0xff]
        %v451 = vld [vmem:[%s5 + $0x68] sm:$0xff]
        %v452 = vld [vmem:[%s5 + $0x70] sm:$0xff]
        %v453 = vld [vmem:[%s5 + $0x78] sm:$0xff]
        %v454 = vld [vmem:[%s6] sm:$0x1]
        %v456 = vperm.slane %v454, 0
        %458 = vmatpush.msra.mxu0 %v453
        %459 = vmatpush.msra.mxu0 %v452
        %460 = vmatpush.msra.mxu0 %v451
        %461 = vmatpush.msra.mxu0 %v450
        %462 = vmatpush.msra.mxu0 %v449
        %463 = vmatpush.msra.mxu0 %v448
        %464 = vmatpush.msra.mxu0 %v447
        %465 = vmatpush.msra.mxu0 %v446
        %466 = vmatpush.msra.mxu0 %v445
        %467 = vmatpush.msra.mxu0 %v444
        %468 = vmatpush.msra.mxu0 %v443
        %469 = vmatpush.msra.mxu0 %v442
        %470 = vmatpush.msra.mxu0 %v441
        %471 = vmatpush.msra.mxu0 %v440
        %472 = vmatpush.msra.mxu0 %v439
        %473 = vmatpush.msra.mxu0 %v438
        %474 = vmatmul.f32.gmra.mxu0 %v437
        %v475 = vpop.f32.mrf.mxu0
        %v476 = vadd.f32 %v456, %v475
        %477 = vdwg.mxu0
        %478 = vst.msk [vmem:[%s283] sm:$0xff] %vm299, %v476
        %s479 = sand.u32 %s195, 1
        %s480 = scalar_lea.sflag [#allocation4], %s479
        %s481 = sand.u32 %s195, 1
        %s482 = smul.addr %s481, 8
        %s483 = scalar_lea.vmem [#allocation3], %s482
        // Predicated region
        $region53: #{tpu_custom_call.1} parent=47 // pred_check
          %p484 = pneg %p205
        $region54: #{tpu_custom_call.1} parent=47 // pred_check_branch
          %486 = sbr.rel (%p484) target = $region56
        $region55: #{tpu_custom_call.1} parent=47 // pred_region
          %488 = vsyncadd %s480, 0
          %s489 = sadd.s32 %s26, %s25
          %s490 = smul.addr %s489, 8
          %s491 = scalar_lea.hbm %s7, %s490
          %s493 = sshll.u32 %s483, 4
          %s494 = int_to_ptr.vmem [resolvable:$true] %s493
          %s495 = sshll.u32 %s491, 4
          %s496 = int_to_ptr.hbm [resolvable:$true] %s495
          %498 = dma.vmem_to_hbm [thread:$0]  %s494, 128, %s496, %s480
        $region56: #{tpu_custom_call.1} parent=47 // pred_fallthru
          _
      $region48: #{tpu_custom_call.1} parent=5 // pred_fallthru
        _
      %p499 = scmp.le.s32.totalorder 2, %s16
      // Predicated region
      $region57: #{tpu_custom_call.1} parent=5 // pred_check
        %p500 = pneg %p499
      $region58: #{tpu_custom_call.1} parent=5 // pred_check_branch
        %502 = sbr.rel (%p500) target = $region60
      $region59: #{tpu_custom_call.1} parent=5 // pred_region
        %s503 = ssub.s32 %s16, 2
        // Predicated region
        $region61: #{tpu_custom_call.1} parent=59 // pred_check
          %p504 = pneg %p211
        $region62: #{tpu_custom_call.1} parent=59 // pred_check_branch
          %506 = sbr.rel (%p504) target = $region64
        $region63: #{tpu_custom_call.1} parent=59 // pred_region
          %s507 = sand.u32 %s196, 1
          %s508 = scalar_lea.sflag [#allocation4], %s507
          %s509 = sand.u32 %s196, 1
          %s510 = smul.addr %s509, 8
          %s511 = scalar_lea.vmem [#allocation3], %s510
          %513 = dma.done %s508, 128
        $region64: #{tpu_custom_call.1} parent=59 // pred_fallthru
          _
      $region60: #{tpu_custom_call.1} parent=5 // pred_fallthru
        _
    $region6: #{tpu_custom_call.1} parent=1 // loop_footer
      %s20 = sadd.s32 1, %s16
    $region7: #{tpu_custom_call.1} parent=1 // loop_footer_branch
      %15 = sbr.rel target = $region3
    $region8: #{tpu_custom_call.1} parent=1 // loop_exit
      _
    %514 = vsyncpa [#allocation4], 1
    %s515 = scalar_lea.sflag [#allocation4], 1
    %516 = vsyncpa %s515, 1

</llo_original>
